<compile_context>
chip_gen: v5e
topology: v5e:2x2
jax: 0.10.0
libtpu: 0.0.40
codegen_flags: <defaults>
</compile_context>

<pallas_src>
import functools

import jax
import jax.numpy as jnp
from jax.experimental import pallas as pl
from jax.experimental.pallas import tpu as pltpu


# --------------------------------------------------------------------------
# Kernel
# --------------------------------------------------------------------------
def _mlp_kernel(x_ref,
                w1_ref, b1_ref,
                w2_ref, b2_ref,
                w3_ref, b3_ref,
                w4_ref, b4_ref,
                w5_ref, b5_ref,
                o_ref):
    """Fused forward pass for one batch tile.

    h   = x @ W1 + b1          (fc_first)
    x0  = h                     (clone)
    h   = relu(h) @ W2 + b2
    h   = relu(h) @ W3 + b3
    h   = relu(h) @ W4 + b4
    h   = relu(x0 + h)          (residual + relu_last)
    out = h @ W5 + b5           (fc_last, output lanes zero-padded to 128)
    """
    x = x_ref[...]                                     # already bf16

    h = jnp.dot(x, w1_ref[...], preferred_element_type=jnp.float32) + b1_ref[...]
    x0 = h

    h = jnp.maximum(h, 0.0).astype(jnp.bfloat16)
    h = jnp.dot(h, w2_ref[...], preferred_element_type=jnp.float32) + b2_ref[...]
    h = jnp.maximum(h, 0.0).astype(jnp.bfloat16)
    h = jnp.dot(h, w3_ref[...], preferred_element_type=jnp.float32) + b3_ref[...]
    h = jnp.maximum(h, 0.0).astype(jnp.bfloat16)
    h = jnp.dot(h, w4_ref[...], preferred_element_type=jnp.float32) + b4_ref[...]

    h = jnp.maximum(x0 + h, 0.0).astype(jnp.bfloat16)

    out = jnp.dot(h, w5_ref[...], preferred_element_type=jnp.float32) + b5_ref[...]
    o_ref[...] = out.astype(o_ref.dtype)


# --------------------------------------------------------------------------
# Helpers
# --------------------------------------------------------------------------
def _round_up(x, m):
    return ((x + m - 1) // m) * m


def _vmem_budget_bytes():
    """~85% of this generation's physical VMEM (v5e/v6e 128 MiB, v7x 64 MiB)."""
    cap = 64 * 1024 * 1024  # conservative fallback = v7x per-TC capacity
    try:
        info = pltpu.get_tpu_info()
        cap = int(getattr(info, "vmem_capacity_bytes", cap))
    except Exception:  # query unavailable (e.g. interpret mode) -> keep fallback
        pass
    return int(0.85 * cap)


@functools.lru_cache(maxsize=None)
def _buffered_supported():
    """Explicit feature detection for BlockSpec(pipeline_mode=pl.Buffered(1))."""
    if not hasattr(pl, "Buffered"):
        return False
    try:
        pl.BlockSpec((8, 128), lambda i: (0, 0), pipeline_mode=pl.Buffered(1))
    except (TypeError, AttributeError):
        return False
    return True


def _choose_block_b(B, cap):
    """Batch-tile selection.

    Single grid step for small/medium batches (avoids the ~0.35us/step grid
    overhead and the duplicated weight DMA across v7x's two TensorCores when
    the MXU M-dim is tiny).  Only tile when the batch is large enough that
    every tile keeps >=256 rows of MXU work (or when a single tile would not
    fit the VMEM budget), using the largest VMEM-fitting tile.
    """
    blk = _round_up(B, 16)          # bf16 activations -> 16-row sublane packing
    if blk <= cap and (B <= 512 or blk < 2 * 256):
        return blk
    return max(16, min(cap, blk, 2048))


# --------------------------------------------------------------------------
# Parameter preparation (hoisted out of the hot path: run once, reuse)
# --------------------------------------------------------------------------
def prepare_params(params):
    """Cast weights to bf16 (native MXU path, half the weight DMA bytes),
    keep biases f32, and zero-pad the output layer to 128 lanes so the
    kernel's stores are lane-dense and unmasked."""
    Ni = params["w1"].shape[0]
    Nh = params["w1"].shape[1]
    No = params["w5"].shape[1]
    No_pad = _round_up(max(No, 128), 128)

    wdt = jnp.bfloat16
    prepared = dict(
        ni=Ni, nh=Nh, no=No, no_pad=No_pad,
        w1=params["w1"].astype(wdt), b1=params["b1"].astype(jnp.float32),
        w2=params["w2"].astype(wdt), b2=params["b2"].astype(jnp.float32),
        w3=params["w3"].astype(wdt), b3=params["b3"].astype(jnp.float32),
        w4=params["w4"].astype(wdt), b4=params["b4"].astype(jnp.float32),
        w5=jnp.pad(params["w5"], ((0, 0), (0, No_pad - No))).astype(wdt),
        b5=jnp.pad(params["b5"], ((0, 0), (0, No_pad - No))).astype(jnp.float32),
    )
    return prepared


# --------------------------------------------------------------------------
# Forward wrapper
# --------------------------------------------------------------------------
def conditional_transform_forward(x, prepared, *, block_b=None):
    """x: [B, Ni] float32.  prepared: output of prepare_params()."""
    B, Ni = x.shape
    Nh, No, No_pad = prepared["nh"], prepared["no"], prepared["no_pad"]
    assert Ni == prepared["ni"]

    buffered = _buffered_supported()
    budget = _vmem_budget_bytes()

    # Resident weight bytes in VMEM (bf16 weights, f32 biases); doubled if the
    # runtime cannot single-buffer constant-index inputs.
    weight_bytes = 2 * (Ni * Nh + 3 * Nh * Nh + Nh * No_pad) + 4 * (4 * Nh + No_pad)
    resident_w = weight_bytes if buffered else 2 * weight_bytes

    # Per-row live bytes: ~6 f32 [*, Nh] intermediates + double-buffered
    # bf16 input tile + double-buffered f32 output tile.
    per_row = 6 * Nh * 4 + 4 * Ni * 2 + 4 * No_pad * 4
    avail = max(budget - resident_w, 2 * 1024 * 1024)
    cap = max(16, min(2048, (avail // per_row) // 16 * 16))

    if block_b is None:
        block_b = _choose_block_b(B, cap)
    B_pad = _round_up(B, block_b)
    num_steps = B_pad // block_b

    # Cast x to bf16 first (halves input DMA bytes), then pad the batch.
    x_bf = x.astype(jnp.bfloat16)
    x_p = x_bf if B_pad == B else jnp.pad(x_bf, ((0, B_pad - B), (0, 0)))

    # Generation-aware scoped-VMEM limit: enough headroom for this kernel,
    # never above ~85% of physical VMEM (v7x is only 64 MiB).
    est = (resident_w
           + 6 * block_b * Nh * 4
           + 4 * block_b * Ni * 2
           + 4 * block_b * No_pad * 4)
    vmem_limit = int(min(budget, max(2 * est, 32 * 1024 * 1024)))

    # Only shard the grid across v7x's two TensorCores when each core gets
    # real work; tiny grids would just duplicate the weight DMA.
    semantics = ("parallel",) if (num_steps >= 4 and block_b >= 256) else ("arbitrary",)

    def const_spec(shape):
        if buffered:
            # Constant index_map -> weights are DMA'd once; one buffer
            # suffices, halving the resident weight footprint.
            return pl.BlockSpec(shape, lambda i: (0, 0),
                                pipeline_mode=pl.Buffered(1))
        return pl.BlockSpec(shape, lambda i: (0, 0))

    in_specs = [
        pl.BlockSpec((block_b, Ni), lambda i: (i, 0)),        # x tile
        const_spec((Ni, Nh)), const_spec((1, Nh)),            # fc_first
        const_spec((Nh, Nh)), const_spec((1, Nh)),            # layers[1]
        const_spec((Nh, Nh)), const_spec((1, Nh)),            # layers[3]
        const_spec((Nh, Nh)), const_spec((1, Nh)),            # layers[5]
        const_spec((Nh, No_pad)), const_spec((1, No_pad)),    # fc_last
    ]
    out_specs = pl.BlockSpec((block_b, No_pad), lambda i: (i, 0))

    fn = pl.pallas_call(
        _mlp_kernel,
        out_shape=jax.ShapeDtypeStruct((B_pad, No_pad), x.dtype),
        grid_spec=pltpu.PrefetchScalarGridSpec(
            num_scalar_prefetch=0,
            grid=(num_steps,),
            in_specs=in_specs,
            out_specs=out_specs,
        ),
        compiler_params=pltpu.CompilerParams(
            dimension_semantics=semantics,
            vmem_limit_bytes=vmem_limit,
        ),
    )
    out = fn(x_p,
             prepared["w1"], prepared["b1"],
             prepared["w2"], prepared["b2"],
             prepared["w3"], prepared["b3"],
             prepared["w4"], prepared["b4"],
             prepared["w5"], prepared["b5"])

    return out[:B, :No]


# --------------------------------------------------------------------------
# Params / references / test
# --------------------------------------------------------------------------
def init_params(key, Ni, No, Nh):
    """Deterministic synthetic init (roughly PyTorch-style uniform fan-in)."""
    keys = jax.random.split(key, 10)

    def linear(kw, kb, fan_in, fan_out):
        bound = 1.0 / jnp.sqrt(jnp.float32(fan_in))
        w = jax.random.uniform(kw, (fan_in, fan_out), jnp.float32, -bound, bound)
        b = jax.random.uniform(kb, (1, fan_out), jnp.float32, -bound, bound)
        return w, b

    w1, b1 = linear(keys[0], keys[1], Ni, Nh)
    w2, b2 = linear(keys[2], keys[3], Nh, Nh)
    w3, b3 = linear(keys[4], keys[5], Nh, Nh)
    w4, b4 = linear(keys[6], keys[7], Nh, Nh)
    w5, b5 = linear(keys[8], keys[9], Nh, No)
    return dict(w1=w1, b1=b1, w2=w2, b2=b2, w3=w3, b3=b3,
                w4=w4, b4=b4, w5=w5, b5=b5)


def reference_forward_f32(x, p):
    h = x @ p["w1"] + p["b1"]
    x0 = h
    h = jnp.maximum(h, 0.0) @ p["w2"] + p["b2"]
    h = jnp.maximum(h, 0.0) @ p["w3"] + p["b3"]
    h = jnp.maximum(h, 0.0) @ p["w4"] + p["b4"]
    h = jnp.maximum(x0 + h, 0.0)
    return h @ p["w5"] + p["b5"]


def reference_forward_bf16(x, p):
    """Matches the kernel's numerics: bf16 matmul inputs, f32 accumulation."""
    def dot(a, w):
        return jnp.dot(a.astype(jnp.bfloat16), w.astype(jnp.bfloat16),
                       preferred_element_type=jnp.float32)
    h = dot(x, p["w1"]) + p["b1"]
    x0 = h
    h = dot(jnp.maximum(h, 0.0), p["w2"]) + p["b2"]
    h = dot(jnp.maximum(h, 0.0), p["w3"]) + p["b3"]
    h = dot(jnp.maximum(h, 0.0), p["w4"]) + p["b4"]
    h = jnp.maximum(x0 + h, 0.0)
    return dot(h, p["w5"]) + p["b5"]


if __name__ == "__main__":
    # Small shapes consistent with the module: Ni=32, No=8, Nh=256, batch=16.
    B, Ni, No, Nh = 16, 32, 8, 256

    key = jax.random.PRNGKey(0)
    kx, kp = jax.random.split(key)
    x = jax.random.normal(kx, (B, Ni), jnp.float32)
    params = init_params(kp, Ni, No, Nh)

    prepared = prepare_params(params)           # bf16 cast / padding done once
    out = conditional_transform_forward(x, prepared)
    out = jax.block_until_ready(out)
    assert out.shape == (B, No)

    ref_match = reference_forward_bf16(x, params)
    ref_f32 = reference_forward_f32(x, params)
    assert jnp.allclose(out, ref_match, atol=2e-3, rtol=2e-3), \
        "mismatch vs bf16-matched JAX reference"
    assert jnp.allclose(out, ref_f32, atol=3e-2, rtol=3e-2), \
        "mismatch vs f32 JAX reference"

    print("KERNEL_OK")
</pallas_src>

<mosaic_0001>
module attributes {stable_mosaic.version = 11 : i64} {
  func.func @_mlp_kernel(%arg0: i32, %arg1: memref<16x32xbf16, #tpu.memory_space<vmem>>, %arg2: memref<32x256xbf16, #tpu.memory_space<vmem>>, %arg3: memref<1x256xf32, #tpu.memory_space<vmem>>, %arg4: memref<256x256xbf16, #tpu.memory_space<vmem>>, %arg5: memref<1x256xf32, #tpu.memory_space<vmem>>, %arg6: memref<256x256xbf16, #tpu.memory_space<vmem>>, %arg7: memref<1x256xf32, #tpu.memory_space<vmem>>, %arg8: memref<256x256xbf16, #tpu.memory_space<vmem>>, %arg9: memref<1x256xf32, #tpu.memory_space<vmem>>, %arg10: memref<256x128xbf16, #tpu.memory_space<vmem>>, %arg11: memref<1x128xf32, #tpu.memory_space<vmem>>, %arg12: memref<16x128xf32, #tpu.memory_space<vmem>>) attributes {dimension_semantics = [#tpu.dimension_semantics<arbitrary>], iteration_bounds = array<i64: 1>, scalar_prefetch = 0 : i64, scratch_operands = 0 : i64, tpu.core_type = #tpu.core_type<tc>, window_params = [{transform_indices = @transform_0, window_bounds = array<i64: 16, 32>}, {pipeline_mode = #tpu.pipeline_mode<synchronous>, transform_indices = @transform_1, window_bounds = array<i64: 32, 256>}, {pipeline_mode = #tpu.pipeline_mode<synchronous>, transform_indices = @transform_2, window_bounds = array<i64: 1, 256>}, {pipeline_mode = #tpu.pipeline_mode<synchronous>, transform_indices = @transform_3, window_bounds = array<i64: 256, 256>}, {pipeline_mode = #tpu.pipeline_mode<synchronous>, transform_indices = @transform_4, window_bounds = array<i64: 1, 256>}, {pipeline_mode = #tpu.pipeline_mode<synchronous>, transform_indices = @transform_5, window_bounds = array<i64: 256, 256>}, {pipeline_mode = #tpu.pipeline_mode<synchronous>, transform_indices = @transform_6, window_bounds = array<i64: 1, 256>}, {pipeline_mode = #tpu.pipeline_mode<synchronous>, transform_indices = @transform_7, window_bounds = array<i64: 256, 256>}, {pipeline_mode = #tpu.pipeline_mode<synchronous>, transform_indices = @transform_8, window_bounds = array<i64: 1, 256>}, {pipeline_mode = #tpu.pipeline_mode<synchronous>, transform_indices = @transform_9, window_bounds = array<i64: 256, 128>}, {pipeline_mode = #tpu.pipeline_mode<synchronous>, transform_indices = @transform_10, window_bounds = array<i64: 1, 128>}, {transform_indices = @transform_11, window_bounds = array<i64: 16, 128>}]} {
    %c0 = arith.constant 0 : index
    %c0_0 = arith.constant 0 : index
    %0 = vector.load %arg1[%c0, %c0_0] : memref<16x32xbf16, #tpu.memory_space<vmem>>, vector<16x32xbf16>
    %c0_1 = arith.constant 0 : index
    %c0_2 = arith.constant 0 : index
    %1 = vector.load %arg2[%c0_1, %c0_2] : memref<32x256xbf16, #tpu.memory_space<vmem>>, vector<32x256xbf16>
    %cst = arith.constant dense<0.000000e+00> : vector<16x256xf32>
    %2 = tpu.matmul %0, %1, %cst {dimension_numbers = #tpu.dot_dimension_numbers<[1], [0], [0], [1], [0, 0, 1, 1], [], []>} : vector<16x32xbf16>, vector<32x256xbf16>, vector<16x256xf32> -> vector<16x256xf32>
    %c0_3 = arith.constant 0 : index
    %c0_4 = arith.constant 0 : index
    %3 = vector.load %arg3[%c0_3, %c0_4] : memref<1x256xf32, #tpu.memory_space<vmem>>, vector<1x256xf32>
    %4 = vector.broadcast %3 : vector<1x256xf32> to vector<16x256xf32>
    %5 = arith.addf %2, %4 : vector<16x256xf32>
    %cst_5 = arith.constant 0.000000e+00 : f32
    %6 = vector.broadcast %cst_5 : f32 to vector<16x256xf32>
    %7 = arith.maximumf %5, %6 : vector<16x256xf32>
    %8 = arith.truncf %7 : vector<16x256xf32> to vector<16x256xbf16>
    %c0_6 = arith.constant 0 : index
    %c0_7 = arith.constant 0 : index
    %9 = vector.load %arg4[%c0_6, %c0_7] : memref<256x256xbf16, #tpu.memory_space<vmem>>, vector<256x256xbf16>
    %cst_8 = arith.constant dense<0.000000e+00> : vector<16x256xf32>
    %10 = tpu.matmul %8, %9, %cst_8 {dimension_numbers = #tpu.dot_dimension_numbers<[1], [0], [0], [1], [0, 0, 1, 1], [], []>} : vector<16x256xbf16>, vector<256x256xbf16>, vector<16x256xf32> -> vector<16x256xf32>
    %c0_9 = arith.constant 0 : index
    %c0_10 = arith.constant 0 : index
    %11 = vector.load %arg5[%c0_9, %c0_10] : memref<1x256xf32, #tpu.memory_space<vmem>>, vector<1x256xf32>
    %12 = vector.broadcast %11 : vector<1x256xf32> to vector<16x256xf32>
    %13 = arith.addf %10, %12 : vector<16x256xf32>
    %cst_11 = arith.constant 0.000000e+00 : f32
    %14 = vector.broadcast %cst_11 : f32 to vector<16x256xf32>
    %15 = arith.maximumf %13, %14 : vector<16x256xf32>
    %16 = arith.truncf %15 : vector<16x256xf32> to vector<16x256xbf16>
    %c0_12 = arith.constant 0 : index
    %c0_13 = arith.constant 0 : index
    %17 = vector.load %arg6[%c0_12, %c0_13] : memref<256x256xbf16, #tpu.memory_space<vmem>>, vector<256x256xbf16>
    %cst_14 = arith.constant dense<0.000000e+00> : vector<16x256xf32>
    %18 = tpu.matmul %16, %17, %cst_14 {dimension_numbers = #tpu.dot_dimension_numbers<[1], [0], [0], [1], [0, 0, 1, 1], [], []>} : vector<16x256xbf16>, vector<256x256xbf16>, vector<16x256xf32> -> vector<16x256xf32>
    %c0_15 = arith.constant 0 : index
    %c0_16 = arith.constant 0 : index
    %19 = vector.load %arg7[%c0_15, %c0_16] : memref<1x256xf32, #tpu.memory_space<vmem>>, vector<1x256xf32>
    %20 = vector.broadcast %19 : vector<1x256xf32> to vector<16x256xf32>
    %21 = arith.addf %18, %20 : vector<16x256xf32>
    %cst_17 = arith.constant 0.000000e+00 : f32
    %22 = vector.broadcast %cst_17 : f32 to vector<16x256xf32>
    %23 = arith.maximumf %21, %22 : vector<16x256xf32>
    %24 = arith.truncf %23 : vector<16x256xf32> to vector<16x256xbf16>
    %c0_18 = arith.constant 0 : index
    %c0_19 = arith.constant 0 : index
    %25 = vector.load %arg8[%c0_18, %c0_19] : memref<256x256xbf16, #tpu.memory_space<vmem>>, vector<256x256xbf16>
    %cst_20 = arith.constant dense<0.000000e+00> : vector<16x256xf32>
    %26 = tpu.matmul %24, %25, %cst_20 {dimension_numbers = #tpu.dot_dimension_numbers<[1], [0], [0], [1], [0, 0, 1, 1], [], []>} : vector<16x256xbf16>, vector<256x256xbf16>, vector<16x256xf32> -> vector<16x256xf32>
    %c0_21 = arith.constant 0 : index
    %c0_22 = arith.constant 0 : index
    %27 = vector.load %arg9[%c0_21, %c0_22] : memref<1x256xf32, #tpu.memory_space<vmem>>, vector<1x256xf32>
    %28 = vector.broadcast %27 : vector<1x256xf32> to vector<16x256xf32>
    %29 = arith.addf %26, %28 : vector<16x256xf32>
    %30 = arith.addf %5, %29 : vector<16x256xf32>
    %cst_23 = arith.constant 0.000000e+00 : f32
    %31 = vector.broadcast %cst_23 : f32 to vector<16x256xf32>
    %32 = arith.maximumf %30, %31 : vector<16x256xf32>
    %33 = arith.truncf %32 : vector<16x256xf32> to vector<16x256xbf16>
    %c0_24 = arith.constant 0 : index
    %c0_25 = arith.constant 0 : index
    %34 = vector.load %arg10[%c0_24, %c0_25] : memref<256x128xbf16, #tpu.memory_space<vmem>>, vector<256x128xbf16>
    %cst_26 = arith.constant dense<0.000000e+00> : vector<16x128xf32>
    %35 = tpu.matmul %33, %34, %cst_26 {dimension_numbers = #tpu.dot_dimension_numbers<[1], [0], [0], [1], [0, 0, 1, 1], [], []>} : vector<16x256xbf16>, vector<256x128xbf16>, vector<16x128xf32> -> vector<16x128xf32>
    %c0_27 = arith.constant 0 : index
    %c0_28 = arith.constant 0 : index
    %36 = vector.load %arg11[%c0_27, %c0_28] : memref<1x128xf32, #tpu.memory_space<vmem>>, vector<1x128xf32>
    %37 = vector.broadcast %36 : vector<1x128xf32> to vector<16x128xf32>
    %38 = arith.addf %35, %37 : vector<16x128xf32>
    %c0_29 = arith.constant 0 : index
    %c0_30 = arith.constant 0 : index
    %39 = vector.load %arg12[%c0_29, %c0_30] : memref<16x128xf32, #tpu.memory_space<vmem>>, vector<16x128xf32>
    tpu.vector_store %arg12[%c0_29, %c0_30], %38 {strides = array<i32>} : memref<16x128xf32, #tpu.memory_space<vmem>>, vector<16x128xf32>,
    return
  }
  func.func @transform_0(%arg0: i32) -> (i32, i32) {
    %c0_i32 = arith.constant 0 : i32
    %c0_i32_0 = arith.constant 0 : i32
    return %arg0, %c0_i32 : i32, i32
  }
  func.func @transform_1(%arg0: i32) -> (i32, i32) {
    %c0_i32 = arith.constant 0 : i32
    %c0_i32_0 = arith.constant 0 : i32
    %c0_i32_1 = arith.constant 0 : i32
    return %c0_i32, %c0_i32_0 : i32, i32
  }
  func.func @transform_2(%arg0: i32) -> (i32, i32) {
    %c0_i32 = arith.constant 0 : i32
    %c0_i32_0 = arith.constant 0 : i32
    %c0_i32_1 = arith.constant 0 : i32
    return %c0_i32, %c0_i32_0 : i32, i32
  }
  func.func @transform_3(%arg0: i32) -> (i32, i32) {
    %c0_i32 = arith.constant 0 : i32
    %c0_i32_0 = arith.constant 0 : i32
    %c0_i32_1 = arith.constant 0 : i32
    return %c0_i32, %c0_i32_0 : i32, i32
  }
  func.func @transform_4(%arg0: i32) -> (i32, i32) {
    %c0_i32 = arith.constant 0 : i32
    %c0_i32_0 = arith.constant 0 : i32
    %c0_i32_1 = arith.constant 0 : i32
    return %c0_i32, %c0_i32_0 : i32, i32
  }
  func.func @transform_5(%arg0: i32) -> (i32, i32) {
    %c0_i32 = arith.constant 0 : i32
    %c0_i32_0 = arith.constant 0 : i32
    %c0_i32_1 = arith.constant 0 : i32
    return %c0_i32, %c0_i32_0 : i32, i32
  }
  func.func @transform_6(%arg0: i32) -> (i32, i32) {
    %c0_i32 = arith.constant 0 : i32
    %c0_i32_0 = arith.constant 0 : i32
    %c0_i32_1 = arith.constant 0 : i32
    return %c0_i32, %c0_i32_0 : i32, i32
  }
  func.func @transform_7(%arg0: i32) -> (i32, i32) {
    %c0_i32 = arith.constant 0 : i32
    %c0_i32_0 = arith.constant 0 : i32
    %c0_i32_1 = arith.constant 0 : i32
    return %c0_i32, %c0_i32_0 : i32, i32
  }
  func.func @transform_8(%arg0: i32) -> (i32, i32) {
    %c0_i32 = arith.constant 0 : i32
    %c0_i32_0 = arith.constant 0 : i32
    %c0_i32_1 = arith.constant 0 : i32
    return %c0_i32, %c0_i32_0 : i32, i32
  }
  func.func @transform_9(%arg0: i32) -> (i32, i32) {
    %c0_i32 = arith.constant 0 : i32
    %c0_i32_0 = arith.constant 0 : i32
    %c0_i32_1 = arith.constant 0 : i32
    return %c0_i32, %c0_i32_0 : i32, i32
  }
  func.func @transform_10(%arg0: i32) -> (i32, i32) {
    %c0_i32 = arith.constant 0 : i32
    %c0_i32_0 = arith.constant 0 : i32
    %c0_i32_1 = arith.constant 0 : i32
    return %c0_i32, %c0_i32_0 : i32, i32
  }
  func.func @transform_11(%arg0: i32) -> (i32, i32) {
    %c0_i32 = arith.constant 0 : i32
    %c0_i32_0 = arith.constant 0 : i32
    return %arg0, %c0_i32 : i32, i32
  }
}

</mosaic_0001>

<llo_original>
// kernel: tpu_custom_call.1
$region0: #{tpu_custom_call.1}
  #allocation0 [shape = 'u32[]', space=smem, size = 0x4, offset = 0x4, fixed_abs, tag = 'smem constant byte address 0x4 - core index']
  #allocation1 [shape = 'u32[72,128]{1,0:T(1,128)}', space=vmem, size = 0x9000, scoped, tag = 'internal scratch']
  %s0 = inlined_call_operand.hbm [shape: bf16[16,32], index: 0, kind: input, shape index: {}]
  %s1 = inlined_call_operand.hbm [shape: bf16[32,256], index: 1, kind: input, shape index: {}]
  %s2 = inlined_call_operand.hbm [shape: f32[1,256], index: 2, kind: input, shape index: {}]
  %s3 = inlined_call_operand.hbm [shape: bf16[256,256], index: 3, kind: input, shape index: {}]
  %s4 = inlined_call_operand.vmem [shape: f32[1,256], index: 4, kind: input, shape index: {}]
  %s5 = inlined_call_operand.hbm [shape: bf16[256,256], index: 5, kind: input, shape index: {}]
  %s6 = inlined_call_operand.vmem [shape: f32[1,256], index: 6, kind: input, shape index: {}]
  %s7 = inlined_call_operand.hbm [shape: bf16[256,256], index: 7, kind: input, shape index: {}]
  %s8 = inlined_call_operand.vmem [shape: f32[1,256], index: 8, kind: input, shape index: {}]
  %s9 = inlined_call_operand.hbm [shape: bf16[256,128], index: 9, kind: input, shape index: {}]
  %s10 = inlined_call_operand.vmem [shape: f32[1,128], index: 10, kind: input, shape index: {}]
  %s11 = inlined_call_operand.hbm [shape: f32[16,128], index: 11, kind: output, shape index: {}]
  %s12 = sld [smem:[#allocation0]]
  $region82: #{tpu_custom_call.1} parent=0
    _
  %s14 = ssub.s32 1, %s12
  %s15 = scalar_select 0, %s14, %s12
  $region1: #{tpu_custom_call.1} parent=0
    #allocation2 [shape = 'u8[4096]{0}', space=vmem, size = 0x1000, scoped, tag = 'input window, operand 0, single buffered']
    #allocation3 [shape = 's32[1]{0}', space=sflag, size = 0x4, scoped, tag = 'scoped memory for tpu_custom_call.1']
    #allocation4 [shape = 's32[1]{0}', space=sflag, size = 0x4, scoped, tag = 'scoped memory for tpu_custom_call.1']
    #allocation5 [shape = 'u8[16384]{0}', space=vmem, size = 0x4000, scoped, tag = 'input window, operand 1, single buffered']
    #allocation6 [shape = 's32[1]{0}', space=sflag, size = 0x4, scoped, tag = 'scoped memory for tpu_custom_call.1']
    #allocation7 [shape = 'u8[1024]{0}', space=vmem, size = 0x400, scoped, tag = 'input window, operand 2, single buffered']
    #allocation8 [shape = 'u8[131072]{0}', space=vmem, size = 0x20000, scoped, tag = 'input window, operand 3, single buffered']
    #allocation9 [shape = 's32[1]{0}', space=sflag, size = 0x4, scoped, tag = 'scoped memory for tpu_custom_call.1']
    #allocation10 [shape = 'u8[131072]{0}', space=vmem, size = 0x20000, scoped, tag = 'input window, operand 5, single buffered']
    #allocation11 [shape = 'u8[131072]{0}', space=vmem, size = 0x20000, scoped, tag = 'input window, operand 7, single buffered']
    #allocation12 [shape = 's32[1]{0}', space=sflag, size = 0x4, scoped, tag = 'scoped memory for tpu_custom_call.1']
    #allocation13 [shape = 'u8[65536]{0}', space=vmem, size = 0x10000, scoped, tag = 'input window, operand 9, single buffered']
    #allocation14 [shape = 'u8[8192]{0}', space=vmem, size = 0x2000, scoped, tag = 'output window, operand 0, single buffered']
    %16 = vsyncpa [#allocation3], 0
    %17 = vsyncpa [#allocation6], 0
    %18 = vsyncpa [#allocation9], 0
    %19 = vsyncpa [#allocation12], 0
    %20 = vsyncpa [#allocation4], 0
    // Predicated region
    $region2: #{tpu_custom_call.1} parent=1 // pred_check
      _
    $region3: #{tpu_custom_call.1} parent=1 // pred_check_branch
      %22 = sbr.rel (0) target = $region5
    $region4: #{tpu_custom_call.1} parent=1 // pred_region
      %24 = vsyncadd [#allocation3], 0
      %s25 = sshll.u32 %s0, 4
      %s26 = int_to_ptr.hbm [resolvable:$true] %s25
      %s27 = sshll.u32 [#allocation2], 4
      %s28 = int_to_ptr.vmem [resolvable:$true] %s27
      %33 = dma.hbm_to_vmem [thread:$0]  %s26, 128, %s28, [#allocation3], 64, 64, 4
    $region5: #{tpu_custom_call.1} parent=1 // pred_fallthru
      _
    // Predicated region
    $region6: #{tpu_custom_call.1} parent=1 // pred_check
      _
    $region7: #{tpu_custom_call.1} parent=1 // pred_check_branch
      %35 = sbr.rel (0) target = $region9
    $region8: #{tpu_custom_call.1} parent=1 // pred_region
      %37 = vsyncadd [#allocation6], 0
      %s38 = sshll.u32 %s1, 4
      %s39 = int_to_ptr.hbm [resolvable:$true] %s38
      %s40 = sshll.u32 [#allocation5], 4
      %s41 = int_to_ptr.vmem [resolvable:$true] %s40
      %46 = dma.hbm_to_vmem [thread:$0]  %s39, 512, %s41, [#allocation6], 128, 128, 8
    $region9: #{tpu_custom_call.1} parent=1 // pred_fallthru
      _
    // Predicated region
    $region10: #{tpu_custom_call.1} parent=1 // pred_check
      _
    $region11: #{tpu_custom_call.1} parent=1 // pred_check_branch
      %48 = sbr.rel (0) target = $region13
    $region12: #{tpu_custom_call.1} parent=1 // pred_region
      %50 = vsyncadd [#allocation6], 0
      %s52 = sshll.u32 %s2, 4
      %s53 = int_to_ptr.hbm [resolvable:$true] %s52
      %s54 = sshll.u32 [#allocation7], 4
      %s55 = int_to_ptr.vmem [resolvable:$true] %s54
      %57 = dma.hbm_to_vmem [thread:$0]  %s53, 32, %s55, [#allocation6]
    $region13: #{tpu_custom_call.1} parent=1 // pred_fallthru
      _
    // Predicated region
    $region14: #{tpu_custom_call.1} parent=1 // pred_check
      _
    $region15: #{tpu_custom_call.1} parent=1 // pred_check_branch
      %59 = sbr.rel (0) target = $region17
    $region16: #{tpu_custom_call.1} parent=1 // pred_region
      %61 = vsyncadd [#allocation9], 0
      %s62 = sshll.u32 %s3, 4
      %s63 = int_to_ptr.hbm [resolvable:$true] %s62
      %s64 = sshll.u32 [#allocation8], 4
      %s65 = int_to_ptr.vmem [resolvable:$true] %s64
      %70 = dma.hbm_to_vmem [thread:$0]  %s63, 4096, %s65, [#allocation9], 128, 128, 8
    $region17: #{tpu_custom_call.1} parent=1 // pred_fallthru
      _
    // Predicated region
    $region18: #{tpu_custom_call.1} parent=1 // pred_check
      _
    $region19: #{tpu_custom_call.1} parent=1 // pred_check_branch
      %72 = sbr.rel (0) target = $region21
    $region20: #{tpu_custom_call.1} parent=1 // pred_region
      _
    $region21: #{tpu_custom_call.1} parent=1 // pred_fallthru
      _
    // Predicated region
    $region22: #{tpu_custom_call.1} parent=1 // pred_check
      _
    $region23: #{tpu_custom_call.1} parent=1 // pred_check_branch
      %74 = sbr.rel (0) target = $region25
    $region24: #{tpu_custom_call.1} parent=1 // pred_region
      %76 = vsyncadd [#allocation9], 0
      %s77 = sshll.u32 %s5, 4
      %s78 = int_to_ptr.hbm [resolvable:$true] %s77
      %s79 = sshll.u32 [#allocation10], 4
      %s80 = int_to_ptr.vmem [resolvable:$true] %s79
      %85 = dma.hbm_to_vmem [thread:$0]  %s78, 4096, %s80, [#allocation9], 128, 128, 8
    $region25: #{tpu_custom_call.1} parent=1 // pred_fallthru
      _
    // Predicated region
    $region26: #{tpu_custom_call.1} parent=1 // pred_check
      _
    $region27: #{tpu_custom_call.1} parent=1 // pred_check_branch
      %87 = sbr.rel (0) target = $region29
    $region28: #{tpu_custom_call.1} parent=1 // pred_region
      _
    $region29: #{tpu_custom_call.1} parent=1 // pred_fallthru
      _
    // Predicated region
    $region30: #{tpu_custom_call.1} parent=1 // pred_check
      _
    $region31: #{tpu_custom_call.1} parent=1 // pred_check_branch
      %89 = sbr.rel (0) target = $region33
    $region32: #{tpu_custom_call.1} parent=1 // pred_region
      %91 = vsyncadd [#allocation12], 0
      %s92 = sshll.u32 %s7, 4
      %s93 = int_to_ptr.hbm [resolvable:$true] %s92
      %s94 = sshll.u32 [#allocation11], 4
      %s95 = int_to_ptr.vmem [resolvable:$true] %s94
      %100 = dma.hbm_to_vmem [thread:$0]  %s93, 4096, %s95, [#allocation12], 128, 128, 8
    $region33: #{tpu_custom_call.1} parent=1 // pred_fallthru
      _
    // Predicated region
    $region34: #{tpu_custom_call.1} parent=1 // pred_check
      _
    $region35: #{tpu_custom_call.1} parent=1 // pred_check_branch
      %102 = sbr.rel (0) target = $region37
    $region36: #{tpu_custom_call.1} parent=1 // pred_region
      _
    $region37: #{tpu_custom_call.1} parent=1 // pred_fallthru
      _
    // Predicated region
    $region38: #{tpu_custom_call.1} parent=1 // pred_check
      _
    $region39: #{tpu_custom_call.1} parent=1 // pred_check_branch
      %104 = sbr.rel (0) target = $region41
    $region40: #{tpu_custom_call.1} parent=1 // pred_region
      %106 = vsyncadd [#allocation12], 0
      %s107 = sshll.u32 %s9, 4
      %s108 = int_to_ptr.hbm [resolvable:$true] %s107
      %s109 = sshll.u32 [#allocation13], 4
      %s110 = int_to_ptr.vmem [resolvable:$true] %s109
      %115 = dma.hbm_to_vmem [thread:$0]  %s108, 2048, %s110, [#allocation12], 64, 64, 4
    $region41: #{tpu_custom_call.1} parent=1 // pred_fallthru
      _
    // Predicated region
    $region42: #{tpu_custom_call.1} parent=1 // pred_check
      _
    $region43: #{tpu_custom_call.1} parent=1 // pred_check_branch
      %117 = sbr.rel (0) target = $region45
    $region44: #{tpu_custom_call.1} parent=1 // pred_region
      _
    $region45: #{tpu_custom_call.1} parent=1 // pred_fallthru
      _
    // Predicated region
    $region46: #{tpu_custom_call.1} parent=1 // pred_check
      _
    $region47: #{tpu_custom_call.1} parent=1 // pred_check_branch
      %119 = sbr.rel (0) target = $region49
    $region48: #{tpu_custom_call.1} parent=1 // pred_region
      %121 = dma.done [#allocation3], 128
    $region49: #{tpu_custom_call.1} parent=1 // pred_fallthru
      _
    // Predicated region
    $region50: #{tpu_custom_call.1} parent=1 // pred_check
      _
    $region51: #{tpu_custom_call.1} parent=1 // pred_check_branch
      %123 = sbr.rel (0) target = $region53
    $region52: #{tpu_custom_call.1} parent=1 // pred_region
      %125 = dma.done [#allocation6], 512
    $region53: #{tpu_custom_call.1} parent=1 // pred_fallthru
      _
    // Predicated region
    $region54: #{tpu_custom_call.1} parent=1 // pred_check
      _
    $region55: #{tpu_custom_call.1} parent=1 // pred_check_branch
      %127 = sbr.rel (0) target = $region57
    $region56: #{tpu_custom_call.1} parent=1 // pred_region
      %129 = dma.done [#allocation6], 32
    $region57: #{tpu_custom_call.1} parent=1 // pred_fallthru
      _
    // Predicated region
    $region58: #{tpu_custom_call.1} parent=1 // pred_check
      _
    $region59: #{tpu_custom_call.1} parent=1 // pred_check_branch
      %131 = sbr.rel (0) target = $region61
    $region60: #{tpu_custom_call.1} parent=1 // pred_region
      %133 = dma.done [#allocation9], 4096
    $region61: #{tpu_custom_call.1} parent=1 // pred_fallthru
      _
    // Predicated region
    $region62: #{tpu_custom_call.1} parent=1 // pred_check
      _
    $region63: #{tpu_custom_call.1} parent=1 // pred_check_branch
      %135 = sbr.rel (0) target = $region65
    $region64: #{tpu_custom_call.1} parent=1 // pred_region
      %137 = dma.done [#allocation9], 4096
    $region65: #{tpu_custom_call.1} parent=1 // pred_fallthru
      _
    // Predicated region
    $region66: #{tpu_custom_call.1} parent=1 // pred_check
      _
    $region67: #{tpu_custom_call.1} parent=1 // pred_check_branch
      %139 = sbr.rel (0) target = $region69
    $region68: #{tpu_custom_call.1} parent=1 // pred_region
      %141 = dma.done [#allocation12], 4096
    $region69: #{tpu_custom_call.1} parent=1 // pred_fallthru
      _
    // Predicated region
    $region70: #{tpu_custom_call.1} parent=1 // pred_check
      _
    $region71: #{tpu_custom_call.1} parent=1 // pred_check_branch
      %143 = sbr.rel (0) target = $region73
    $region72: #{tpu_custom_call.1} parent=1 // pred_region
      %145 = dma.done [#allocation12], 2048
    $region73: #{tpu_custom_call.1} parent=1 // pred_fallthru
      _
    %v147 = vld [vmem:[#allocation2] sm:$0xf]
    %v148 = vld [vmem:[#allocation2 + $0x4] sm:$0xf]
    %v149 = vld [vmem:[#allocation5] sm:$0xff]
    %v150 = vld [vmem:[#allocation5 + $0x8] sm:$0xff]
    %v151 = vld [vmem:[#allocation5 + $0x10] sm:$0xff]
    %v152 = vld [vmem:[#allocation5 + $0x18] sm:$0xff]
    %v153 = vld [vmem:[#allocation7] sm:$0x3]
    %v155 = vperm.slane %v153, 0
    %v156 = vperm.slane %v153, 1
    %v161 = vunpack.c.l.b16 %v147
    %v162 = vunpack.c.l.b16 %v148
    %v163 = vpack.c.b16 %v162, %v161
    %v168 = vunpack.c.l.b16 %v149
    %v169 = vunpack.c.h.b16 %v149
    %v170 = vunpack.c.l.b16 %v150
    %v171 = vunpack.c.h.b16 %v150
    %v172 = vunpack.c.l.b16 %v151
    %v173 = vunpack.c.h.b16 %v151
    %v174 = vunpack.c.l.b16 %v152
    %v175 = vunpack.c.h.b16 %v152
    %v176 = vpack.c.b16 %v170, %v168
    %v177 = vpack.c.b16 %v171, %v169
    %v178 = vpack.c.b16 %v174, %v172
    %v179 = vpack.c.b16 %v175, %v173
    %vm184 = vcmask 261120
    %v186 = vsel %vm184, %v163, 0
    %188 = vmatpush.bf16.msra.mxu0 0
    %189 = vmatpush.bf16.msra.mxu0 0
    %190 = vmatpush.bf16.msra.mxu0 0
    %191 = vmatpush.bf16.msra.mxu0 0
    %192 = vmatpush.bf16.msra.mxu0 0
    %193 = vmatpush.bf16.msra.mxu0 0
    %194 = vmatpush.bf16.msra.mxu0 %v178
    %195 = vmatpush.bf16.msra.mxu0 %v176
    %196 = vmatmul.bf16.gmra.mxu0 %v186
    %v197 = vpop.f32.mrf.mxu0
    %v198 = vadd.f32 %v155, %v197
    %v199 = vpop.f32.mrf.mxu0
    %v200 = vadd.f32 %v155, %v199
    %201 = vdwg.mxu0
    %202 = vmatpush.bf16.msra.mxu0 0
    %203 = vmatpush.bf16.msra.mxu0 0
    %204 = vmatpush.bf16.msra.mxu0 0
    %205 = vmatpush.bf16.msra.mxu0 0
    %206 = vmatpush.bf16.msra.mxu0 0
    %207 = vmatpush.bf16.msra.mxu0 0
    %208 = vmatpush.bf16.msra.mxu0 %v179
    %209 = vmatpush.bf16.msra.mxu0 %v177
    %210 = vmatmul.bf16.gmra.mxu0 %v186
    %v211 = vpop.f32.mrf.mxu0
    %v212 = vadd.f32 %v156, %v211
    %v213 = vpop.f32.mrf.mxu0
    %v214 = vadd.f32 %v156, %v213
    %215 = vdwg.mxu0
    %v216 = vmax.f32 %v198, 0.0
    %v217 = vmax.f32 %v212, 0.0
    %v218 = vmax.f32 %v200, 0.0
    %v219 = vmax.f32 %v214, 0.0
    %v220 = vpack.c.bf16 %v218, %v216
    %v221 = vpack.c.bf16 %v219, %v217
    %v222 = vld [vmem:[#allocation8] sm:$0xff]
    %v223 = vld [vmem:[#allocation8 + $0x8] sm:$0xff]
    %v224 = vld [vmem:[#allocation8 + $0x10] sm:$0xff]
    %v225 = vld [vmem:[#allocation8 + $0x18] sm:$0xff]
    %v226 = vld [vmem:[#allocation8 + $0x20] sm:$0xff]
    %v227 = vld [vmem:[#allocation8 + $0x28] sm:$0xff]
    %v228 = vld [vmem:[#allocation8 + $0x30] sm:$0xff]
    %v229 = vld [vmem:[#allocation8 + $0x38] sm:$0xff]
    %v230 = vld [vmem:[#allocation8 + $0x40] sm:$0xff]
    %v231 = vld [vmem:[#allocation8 + $0x48] sm:$0xff]
    %v232 = vld [vmem:[#allocation8 + $0x50] sm:$0xff]
    %v233 = vld [vmem:[#allocation8 + $0x58] sm:$0xff]
    %v234 = vld [vmem:[#allocation8 + $0x60] sm:$0xff]
    %v235 = vld [vmem:[#allocation8 + $0x68] sm:$0xff]
    %v236 = vld [vmem:[#allocation8 + $0x70] sm:$0xff]
    %v237 = vld [vmem:[#allocation8 + $0x78] sm:$0xff]
    %v238 = vld [vmem:[#allocation8 + $0x80] sm:$0xff]
    %v239 = vld [vmem:[#allocation8 + $0x88] sm:$0xff]
    %v240 = vld [vmem:[#allocation8 + $0x90] sm:$0xff]
    %v241 = vld [vmem:[#allocation8 + $0x98] sm:$0xff]
    %v242 = vld [vmem:[#allocation8 + $0xa0] sm:$0xff]
    %v243 = vld [vmem:[#allocation8 + $0xa8] sm:$0xff]
    %v244 = vld [vmem:[#allocation8 + $0xb0] sm:$0xff]
    %v245 = vld [vmem:[#allocation8 + $0xb8] sm:$0xff]
    %v246 = vld [vmem:[#allocation8 + $0xc0] sm:$0xff]
    %v247 = vld [vmem:[#allocation8 + $0xc8] sm:$0xff]
    %v248 = vld [vmem:[#allocation8 + $0xd0] sm:$0xff]
    %v249 = vld [vmem:[#allocation8 + $0xd8] sm:$0xff]
    %v250 = vld [vmem:[#allocation8 + $0xe0] sm:$0xff]
    %v251 = vld [vmem:[#allocation8 + $0xe8] sm:$0xff]
    %v252 = vld [vmem:[#allocation8 + $0xf0] sm:$0xff]
    %v253 = vld [vmem:[#allocation8 + $0xf8] sm:$0xff]
    %v254 = vld [vmem:[%s4] sm:$0x3]
    %v256 = vperm.slane %v254, 0
    %v257 = vperm.slane %v254, 1
    %v292 = vunpack.c.l.b16 %v222
    %v293 = vunpack.c.h.b16 %v222
    %v294 = vunpack.c.l.b16 %v223
    %v295 = vunpack.c.h.b16 %v223
    %v296 = vunpack.c.l.b16 %v224
    %v297 = vunpack.c.h.b16 %v224
    %v298 = vunpack.c.l.b16 %v225
    %v299 = vunpack.c.h.b16 %v225
    %v300 = vunpack.c.l.b16 %v226
    %v301 = vunpack.c.h.b16 %v226
    %v302 = vunpack.c.l.b16 %v227
    %v303 = vunpack.c.h.b16 %v227
    %v304 = vunpack.c.l.b16 %v228
    %v305 = vunpack.c.h.b16 %v228
    %v306 = vunpack.c.l.b16 %v229
    %v307 = vunpack.c.h.b16 %v229
    %v308 = vunpack.c.l.b16 %v230
    %v309 = vunpack.c.h.b16 %v230
    %v310 = vunpack.c.l.b16 %v231
    %v311 = vunpack.c.h.b16 %v231
    %v312 = vunpack.c.l.b16 %v232
    %v313 = vunpack.c.h.b16 %v232
    %v314 = vunpack.c.l.b16 %v233
    %v315 = vunpack.c.h.b16 %v233
    %v316 = vunpack.c.l.b16 %v234
    %v317 = vunpack.c.h.b16 %v234
    %v318 = vunpack.c.l.b16 %v235
    %v319 = vunpack.c.h.b16 %v235
    %v320 = vunpack.c.l.b16 %v236
    %v321 = vunpack.c.h.b16 %v236
    %v322 = vunpack.c.l.b16 %v237
    %v323 = vunpack.c.h.b16 %v237
    %v324 = vunpack.c.l.b16 %v238
    %v325 = vunpack.c.h.b16 %v238
    %v326 = vunpack.c.l.b16 %v239
    %v327 = vunpack.c.h.b16 %v239
    %v328 = vunpack.c.l.b16 %v240
    %v329 = vunpack.c.h.b16 %v240
    %v330 = vunpack.c.l.b16 %v241
    %v331 = vunpack.c.h.b16 %v241
    %v332 = vunpack.c.l.b16 %v242
    %v333 = vunpack.c.h.b16 %v242
    %v334 = vunpack.c.l.b16 %v243
    %v335 = vunpack.c.h.b16 %v243
    %v336 = vunpack.c.l.b16 %v244
    %v337 = vunpack.c.h.b16 %v244
    %v338 = vunpack.c.l.b16 %v245
    %v339 = vunpack.c.h.b16 %v245
    %v340 = vunpack.c.l.b16 %v246
    %v341 = vunpack.c.h.b16 %v246
    %v342 = vunpack.c.l.b16 %v247
    %v343 = vunpack.c.h.b16 %v247
    %v344 = vunpack.c.l.b16 %v248
    %v345 = vunpack.c.h.b16 %v248
    %v346 = vunpack.c.l.b16 %v249
    %v347 = vunpack.c.h.b16 %v249
    %v348 = vunpack.c.l.b16 %v250
    %v349 = vunpack.c.h.b16 %v250
    %v350 = vunpack.c.l.b16 %v251
    %v351 = vunpack.c.h.b16 %v251
    %v352 = vunpack.c.l.b16 %v252
    %v353 = vunpack.c.h.b16 %v252
    %v354 = vunpack.c.l.b16 %v253
    %v355 = vunpack.c.h.b16 %v253
    %v356 = vpack.c.b16 %v294, %v292
    %v357 = vpack.c.b16 %v295, %v293
    %v358 = vpack.c.b16 %v298, %v296
    %v359 = vpack.c.b16 %v299, %v297
    %v360 = vpack.c.b16 %v302, %v300
    %v361 = vpack.c.b16 %v303, %v301
    %v362 = vpack.c.b16 %v306, %v304
    %v363 = vpack.c.b16 %v307, %v305
    %v364 = vpack.c.b16 %v310, %v308
    %v365 = vpack.c.b16 %v311, %v309
    %v366 = vpack.c.b16 %v314, %v312
    %v367 = vpack.c.b16 %v315, %v313
    %v368 = vpack.c.b16 %v318, %v316
    %v369 = vpack.c.b16 %v319, %v317
    %v370 = vpack.c.b16 %v322, %v320
    %v371 = vpack.c.b16 %v323, %v321
    %v372 = vpack.c.b16 %v326, %v324
    %v373 = vpack.c.b16 %v327, %v325
    %v374 = vpack.c.b16 %v330, %v328
    %v375 = vpack.c.b16 %v331, %v329
    %v376 = vpack.c.b16 %v334, %v332
    %v377 = vpack.c.b16 %v335, %v333
    %v378 = vpack.c.b16 %v338, %v336
    %v379 = vpack.c.b16 %v339, %v337
    %v380 = vpack.c.b16 %v342, %v340
    %v381 = vpack.c.b16 %v343, %v341
    %v382 = vpack.c.b16 %v346, %v344
    %v383 = vpack.c.b16 %v347, %v345
    %v384 = vpack.c.b16 %v350, %v348
    %v385 = vpack.c.b16 %v351, %v349
    %v386 = vpack.c.b16 %v354, %v352
    %v387 = vpack.c.b16 %v355, %v353
    %420 = vmatpush.bf16.msra.mxu0 %v370
    %421 = vmatpush.bf16.msra.mxu0 %v368
    %422 = vmatpush.bf16.msra.mxu0 %v366
    %423 = vmatpush.bf16.msra.mxu0 %v364
    %424 = vmatpush.bf16.msra.mxu0 %v362
    %425 = vmatpush.bf16.msra.mxu0 %v360
    %426 = vmatpush.bf16.msra.mxu0 %v358
    %427 = vmatpush.bf16.msra.mxu0 %v356
    %428 = vmatmul.bf16.gmra.mxu0 %v220
    %v429 = vpop.f32.mrf.mxu0
    %v430 = vadd.f32 %v256, %v429
    %v431 = vpop.f32.mrf.mxu0
    %v432 = vadd.f32 %v256, %v431
    %433 = vdwg.mxu0
    %434 = vmatpush.bf16.msra.mxu0 %v386
    %435 = vmatpush.bf16.msra.mxu0 %v384
    %436 = vmatpush.bf16.msra.mxu0 %v382
    %437 = vmatpush.bf16.msra.mxu0 %v380
    %438 = vmatpush.bf16.msra.mxu0 %v378
    %439 = vmatpush.bf16.msra.mxu0 %v376
    %440 = vmatpush.bf16.msra.mxu0 %v374
    %441 = vmatpush.bf16.msra.mxu0 %v372
    %442 = vmatmul.bf16.gmra.mxu0 %v221
    %v443 = vpop.f32.mrf.mxu0
    %v444 = vadd.f32 %v430, %v443
    %v445 = vpop.f32.mrf.mxu0
    %v446 = vadd.f32 %v432, %v445
    %447 = vdwg.mxu0
    %448 = vmatpush.bf16.msra.mxu0 %v371
    %449 = vmatpush.bf16.msra.mxu0 %v369
    %450 = vmatpush.bf16.msra.mxu0 %v367
    %451 = vmatpush.bf16.msra.mxu0 %v365
    %452 = vmatpush.bf16.msra.mxu0 %v363
    %453 = vmatpush.bf16.msra.mxu0 %v361
    %454 = vmatpush.bf16.msra.mxu0 %v359
    %455 = vmatpush.bf16.msra.mxu0 %v357
    %456 = vmatmul.bf16.gmra.mxu0 %v220
    %v457 = vpop.f32.mrf.mxu0
    %v458 = vadd.f32 %v257, %v457
    %v459 = vpop.f32.mrf.mxu0
    %v460 = vadd.f32 %v257, %v459
    %461 = vdwg.mxu0
    %462 = vmatpush.bf16.msra.mxu0 %v387
    %463 = vmatpush.bf16.msra.mxu0 %v385
    %464 = vmatpush.bf16.msra.mxu0 %v383
    %465 = vmatpush.bf16.msra.mxu0 %v381
    %466 = vmatpush.bf16.msra.mxu0 %v379
    %467 = vmatpush.bf16.msra.mxu0 %v377
    %468 = vmatpush.bf16.msra.mxu0 %v375
    %469 = vmatpush.bf16.msra.mxu0 %v373
    %470 = vmatmul.bf16.gmra.mxu0 %v221
    %v471 = vpop.f32.mrf.mxu0
    %v472 = vadd.f32 %v458, %v471
    %v473 = vpop.f32.mrf.mxu0
    %v474 = vadd.f32 %v460, %v473
    %475 = vdwg.mxu0
    %v476 = vmax.f32 %v444, 0.0
    %v477 = vmax.f32 %v472, 0.0
    %v478 = vmax.f32 %v446, 0.0
    %v479 = vmax.f32 %v474, 0.0
    %v480 = vpack.c.bf16 %v478, %v476
    %v481 = vpack.c.bf16 %v479, %v477
    %v482 = vld [vmem:[#allocation10] sm:$0xff]
    %v483 = vld [vmem:[#allocation10 + $0x8] sm:$0xff]
    %v484 = vld [vmem:[#allocation10 + $0x10] sm:$0xff]
    %v485 = vld [vmem:[#allocation10 + $0x18] sm:$0xff]
    %v486 = vld [vmem:[#allocation10 + $0x20] sm:$0xff]
    %v487 = vld [vmem:[#allocation10 + $0x28] sm:$0xff]
    %v488 = vld [vmem:[#allocation10 + $0x30] sm:$0xff]
    %v489 = vld [vmem:[#allocation10 + $0x38] sm:$0xff]
    %v490 = vld [vmem:[#allocation10 + $0x40] sm:$0xff]
    %v491 = vld [vmem:[#allocation10 + $0x48] sm:$0xff]
    %v492 = vld [vmem:[#allocation10 + $0x50] sm:$0xff]
    %v493 = vld [vmem:[#allocation10 + $0x58] sm:$0xff]
    %v494 = vld [vmem:[#allocation10 + $0x60] sm:$0xff]
    %v495 = vld [vmem:[#allocation10 + $0x68] sm:$0xff]
    %v496 = vld [vmem:[#allocation10 + $0x70] sm:$0xff]
    %v497 = vld [vmem:[#allocation10 + $0x78] sm:$0xff]
    %v498 = vld [vmem:[#allocation10 + $0x80] sm:$0xff]
    %v499 = vld [vmem:[#allocation10 + $0x88] sm:$0xff]
    %v500 = vld [vmem:[#allocation10 + $0x90] sm:$0xff]
    %v501 = vld [vmem:[#allocation10 + $0x98] sm:$0xff]
    %v502 = vld [vmem:[#allocation10 + $0xa0] sm:$0xff]
    %v503 = vld [vmem:[#allocation10 + $0xa8] sm:$0xff]
    %v504 = vld [vmem:[#allocation10 + $0xb0] sm:$0xff]
    %v505 = vld [vmem:[#allocation10 + $0xb8] sm:$0xff]
    %v506 = vld [vmem:[#allocation10 + $0xc0] sm:$0xff]
    %v507 = vld [vmem:[#allocation10 + $0xc8] sm:$0xff]
    %v508 = vld [vmem:[#allocation10 + $0xd0] sm:$0xff]
    %v509 = vld [vmem:[#allocation10 + $0xd8] sm:$0xff]
    %v510 = vld [vmem:[#allocation10 + $0xe0] sm:$0xff]
    %v511 = vld [vmem:[#allocation10 + $0xe8] sm:$0xff]
    %v512 = vld [vmem:[#allocation10 + $0xf0] sm:$0xff]
    %v513 = vld [vmem:[#allocation10 + $0xf8] sm:$0xff]
    %v514 = vld [vmem:[%s6] sm:$0x3]
    %v516 = vperm.slane %v514, 0
    %v517 = vperm.slane %v514, 1
    %v552 = vunpack.c.l.b16 %v482
    %v553 = vunpack.c.h.b16 %v482
    %v554 = vunpack.c.l.b16 %v483
    %v555 = vunpack.c.h.b16 %v483
    %v556 = vunpack.c.l.b16 %v484
    %v557 = vunpack.c.h.b16 %v484
    %v558 = vunpack.c.l.b16 %v485
    %v559 = vunpack.c.h.b16 %v485
    %v560 = vunpack.c.l.b16 %v486
    %v561 = vunpack.c.h.b16 %v486
    %v562 = vunpack.c.l.b16 %v487
    %v563 = vunpack.c.h.b16 %v487
    %v564 = vunpack.c.l.b16 %v488
    %v565 = vunpack.c.h.b16 %v488
    %v566 = vunpack.c.l.b16 %v489
    %v567 = vunpack.c.h.b16 %v489
    %v568 = vunpack.c.l.b16 %v490
    %v569 = vunpack.c.h.b16 %v490
    %v570 = vunpack.c.l.b16 %v491
    %v571 = vunpack.c.h.b16 %v491
    %v572 = vunpack.c.l.b16 %v492
    %v573 = vunpack.c.h.b16 %v492
    %v574 = vunpack.c.l.b16 %v493
    %v575 = vunpack.c.h.b16 %v493
    %v576 = vunpack.c.l.b16 %v494
    %v577 = vunpack.c.h.b16 %v494
    %v578 = vunpack.c.l.b16 %v495
    %v579 = vunpack.c.h.b16 %v495
    %v580 = vunpack.c.l.b16 %v496
    %v581 = vunpack.c.h.b16 %v496
    %v582 = vunpack.c.l.b16 %v497
    %v583 = vunpack.c.h.b16 %v497
    %v584 = vunpack.c.l.b16 %v498
    %v585 = vunpack.c.h.b16 %v498
    %v586 = vunpack.c.l.b16 %v499
    %v587 = vunpack.c.h.b16 %v499
    %v588 = vunpack.c.l.b16 %v500
    %v589 = vunpack.c.h.b16 %v500
    %v590 = vunpack.c.l.b16 %v501
    %v591 = vunpack.c.h.b16 %v501
    %v592 = vunpack.c.l.b16 %v502
    %v593 = vunpack.c.h.b16 %v502
    %v594 = vunpack.c.l.b16 %v503
    %v595 = vunpack.c.h.b16 %v503
    %v596 = vunpack.c.l.b16 %v504
    %v597 = vunpack.c.h.b16 %v504
    %v598 = vunpack.c.l.b16 %v505
    %v599 = vunpack.c.h.b16 %v505
    %v600 = vunpack.c.l.b16 %v506
    %v601 = vunpack.c.h.b16 %v506
    %v602 = vunpack.c.l.b16 %v507
    %v603 = vunpack.c.h.b16 %v507
    %v604 = vunpack.c.l.b16 %v508
    %v605 = vunpack.c.h.b16 %v508
    %v606 = vunpack.c.l.b16 %v509
    %v607 = vunpack.c.h.b16 %v509
    %v608 = vunpack.c.l.b16 %v510
    %v609 = vunpack.c.h.b16 %v510
    %v610 = vunpack.c.l.b16 %v511
    %v611 = vunpack.c.h.b16 %v511
    %v612 = vunpack.c.l.b16 %v512
    %v613 = vunpack.c.h.b16 %v512
    %v614 = vunpack.c.l.b16 %v513
    %v615 = vunpack.c.h.b16 %v513
    %v616 = vpack.c.b16 %v554, %v552
    %v617 = vpack.c.b16 %v555, %v553
    %v618 = vpack.c.b16 %v558, %v556
    %v619 = vpack.c.b16 %v559, %v557
    %v620 = vpack.c.b16 %v562, %v560
    %v621 = vpack.c.b16 %v563, %v561
    %v622 = vpack.c.b16 %v566, %v564
    %v623 = vpack.c.b16 %v567, %v565
    %v624 = vpack.c.b16 %v570, %v568
    %v625 = vpack.c.b16 %v571, %v569
    %v626 = vpack.c.b16 %v574, %v572
    %v627 = vpack.c.b16 %v575, %v573
    %v628 = vpack.c.b16 %v578, %v576
    %v629 = vpack.c.b16 %v579, %v577
    %v630 = vpack.c.b16 %v582, %v580
    %v631 = vpack.c.b16 %v583, %v581
    %v632 = vpack.c.b16 %v586, %v584
    %v633 = vpack.c.b16 %v587, %v585
    %v634 = vpack.c.b16 %v590, %v588
    %v635 = vpack.c.b16 %v591, %v589
    %v636 = vpack.c.b16 %v594, %v592
    %v637 = vpack.c.b16 %v595, %v593
    %v638 = vpack.c.b16 %v598, %v596
    %v639 = vpack.c.b16 %v599, %v597
    %v640 = vpack.c.b16 %v602, %v600
    %v641 = vpack.c.b16 %v603, %v601
    %v642 = vpack.c.b16 %v606, %v604
    %v643 = vpack.c.b16 %v607, %v605
    %v644 = vpack.c.b16 %v610, %v608
    %v645 = vpack.c.b16 %v611, %v609
    %v646 = vpack.c.b16 %v614, %v612
    %v647 = vpack.c.b16 %v615, %v613
    %680 = vmatpush.bf16.msra.mxu0 %v630
    %681 = vmatpush.bf16.msra.mxu0 %v628
    %682 = vmatpush.bf16.msra.mxu0 %v626
    %683 = vmatpush.bf16.msra.mxu0 %v624
    %684 = vmatpush.bf16.msra.mxu0 %v622
    %685 = vmatpush.bf16.msra.mxu0 %v620
    %686 = vmatpush.bf16.msra.mxu0 %v618
    %687 = vmatpush.bf16.msra.mxu0 %v616
    %688 = vmatmul.bf16.gmra.mxu0 %v480
    %v689 = vpop.f32.mrf.mxu0
    %v690 = vadd.f32 %v516, %v689
    %v691 = vpop.f32.mrf.mxu0
    %v692 = vadd.f32 %v516, %v691
    %693 = vdwg.mxu0
    %694 = vmatpush.bf16.msra.mxu0 %v646
    %695 = vmatpush.bf16.msra.mxu0 %v644
    %696 = vmatpush.bf16.msra.mxu0 %v642
    %697 = vmatpush.bf16.msra.mxu0 %v640
    %698 = vmatpush.bf16.msra.mxu0 %v638
    %699 = vmatpush.bf16.msra.mxu0 %v636
    %700 = vmatpush.bf16.msra.mxu0 %v634
    %701 = vmatpush.bf16.msra.mxu0 %v632
    %702 = vmatmul.bf16.gmra.mxu0 %v481
    %v703 = vpop.f32.mrf.mxu0
    %v704 = vadd.f32 %v690, %v703
    %v705 = vpop.f32.mrf.mxu0
    %v706 = vadd.f32 %v692, %v705
    %707 = vdwg.mxu0
    %708 = vmatpush.bf16.msra.mxu0 %v631
    %709 = vmatpush.bf16.msra.mxu0 %v629
    %710 = vmatpush.bf16.msra.mxu0 %v627
    %711 = vmatpush.bf16.msra.mxu0 %v625
    %712 = vmatpush.bf16.msra.mxu0 %v623
    %713 = vmatpush.bf16.msra.mxu0 %v621
    %714 = vmatpush.bf16.msra.mxu0 %v619
    %715 = vmatpush.bf16.msra.mxu0 %v617
    %716 = vmatmul.bf16.gmra.mxu0 %v480
    %v717 = vpop.f32.mrf.mxu0
    %v718 = vadd.f32 %v517, %v717
    %v719 = vpop.f32.mrf.mxu0
    %v720 = vadd.f32 %v517, %v719
    %721 = vdwg.mxu0
    %722 = vmatpush.bf16.msra.mxu0 %v647
    %723 = vmatpush.bf16.msra.mxu0 %v645
    %724 = vmatpush.bf16.msra.mxu0 %v643
    %725 = vmatpush.bf16.msra.mxu0 %v641
    %726 = vmatpush.bf16.msra.mxu0 %v639
    %727 = vmatpush.bf16.msra.mxu0 %v637
    %728 = vmatpush.bf16.msra.mxu0 %v635
    %729 = vmatpush.bf16.msra.mxu0 %v633
    %730 = vmatmul.bf16.gmra.mxu0 %v481
    %v731 = vpop.f32.mrf.mxu0
    %v732 = vadd.f32 %v718, %v731
    %v733 = vpop.f32.mrf.mxu0
    %v734 = vadd.f32 %v720, %v733
    %735 = vdwg.mxu0
    %v736 = vmax.f32 %v704, 0.0
    %v737 = vmax.f32 %v732, 0.0
    %v738 = vmax.f32 %v706, 0.0
    %v739 = vmax.f32 %v734, 0.0
    %v740 = vpack.c.bf16 %v738, %v736
    %v741 = vpack.c.bf16 %v739, %v737
    %v742 = vld [vmem:[#allocation11] sm:$0xff]
    %v743 = vld [vmem:[#allocation11 + $0x8] sm:$0xff]
    %v744 = vld [vmem:[#allocation11 + $0x10] sm:$0xff]
    %v745 = vld [vmem:[#allocation11 + $0x18] sm:$0xff]
    %v746 = vld [vmem:[#allocation11 + $0x20] sm:$0xff]
    %v747 = vld [vmem:[#allocation11 + $0x28] sm:$0xff]
    %v748 = vld [vmem:[#allocation11 + $0x30] sm:$0xff]
    %v749 = vld [vmem:[#allocation11 + $0x38] sm:$0xff]
    %v750 = vld [vmem:[#allocation11 + $0x40] sm:$0xff]
    %v751 = vld [vmem:[#allocation11 + $0x48] sm:$0xff]
    %v752 = vld [vmem:[#allocation11 + $0x50] sm:$0xff]
    %v753 = vld [vmem:[#allocation11 + $0x58] sm:$0xff]
    %v754 = vld [vmem:[#allocation11 + $0x60] sm:$0xff]
    %v755 = vld [vmem:[#allocation11 + $0x68] sm:$0xff]
    %v756 = vld [vmem:[#allocation11 + $0x70] sm:$0xff]
    %v757 = vld [vmem:[#allocation11 + $0x78] sm:$0xff]
    %v758 = vld [vmem:[#allocation11 + $0x80] sm:$0xff]
    %v759 = vld [vmem:[#allocation11 + $0x88] sm:$0xff]
    %v760 = vld [vmem:[#allocation11 + $0x90] sm:$0xff]
    %v761 = vld [vmem:[#allocation11 + $0x98] sm:$0xff]
    %v762 = vld [vmem:[#allocation11 + $0xa0] sm:$0xff]
    %v763 = vld [vmem:[#allocation11 + $0xa8] sm:$0xff]
    %v764 = vld [vmem:[#allocation11 + $0xb0] sm:$0xff]
    %v765 = vld [vmem:[#allocation11 + $0xb8] sm:$0xff]
    %v766 = vld [vmem:[#allocation11 + $0xc0] sm:$0xff]
    %v767 = vld [vmem:[#allocation11 + $0xc8] sm:$0xff]
    %v768 = vld [vmem:[#allocation11 + $0xd0] sm:$0xff]
    %v769 = vld [vmem:[#allocation11 + $0xd8] sm:$0xff]
    %v770 = vld [vmem:[#allocation11 + $0xe0] sm:$0xff]
    %v771 = vld [vmem:[#allocation11 + $0xe8] sm:$0xff]
    %v772 = vld [vmem:[#allocation11 + $0xf0] sm:$0xff]
    %v773 = vld [vmem:[#allocation11 + $0xf8] sm:$0xff]
    %v774 = vld [vmem:[%s8] sm:$0x3]
    %v776 = vperm.slane %v774, 0
    %v777 = vperm.slane %v774, 1
    %v812 = vunpack.c.l.b16 %v742
    %v813 = vunpack.c.h.b16 %v742
    %v814 = vunpack.c.l.b16 %v743
    %v815 = vunpack.c.h.b16 %v743
    %v816 = vunpack.c.l.b16 %v744
    %v817 = vunpack.c.h.b16 %v744
    %v818 = vunpack.c.l.b16 %v745
    %v819 = vunpack.c.h.b16 %v745
    %v820 = vunpack.c.l.b16 %v746
    %v821 = vunpack.c.h.b16 %v746
    %v822 = vunpack.c.l.b16 %v747
    %v823 = vunpack.c.h.b16 %v747
    %v824 = vunpack.c.l.b16 %v748
    %v825 = vunpack.c.h.b16 %v748
    %v826 = vunpack.c.l.b16 %v749
    %v827 = vunpack.c.h.b16 %v749
    %v828 = vunpack.c.l.b16 %v750
    %v829 = vunpack.c.h.b16 %v750
    %v830 = vunpack.c.l.b16 %v751
    %v831 = vunpack.c.h.b16 %v751
    %v832 = vunpack.c.l.b16 %v752
    %v833 = vunpack.c.h.b16 %v752
    %v834 = vunpack.c.l.b16 %v753
    %v835 = vunpack.c.h.b16 %v753
    %v836 = vunpack.c.l.b16 %v754
    %v837 = vunpack.c.h.b16 %v754
    %v838 = vunpack.c.l.b16 %v755
    %v839 = vunpack.c.h.b16 %v755
    %v840 = vunpack.c.l.b16 %v756
    %v841 = vunpack.c.h.b16 %v756
    %v842 = vunpack.c.l.b16 %v757
    %v843 = vunpack.c.h.b16 %v757
    %v844 = vunpack.c.l.b16 %v758
    %v845 = vunpack.c.h.b16 %v758
    %v846 = vunpack.c.l.b16 %v759
    %v847 = vunpack.c.h.b16 %v759
    %v848 = vunpack.c.l.b16 %v760
    %v849 = vunpack.c.h.b16 %v760
    %v850 = vunpack.c.l.b16 %v761
    %v851 = vunpack.c.h.b16 %v761
    %v852 = vunpack.c.l.b16 %v762
    %v853 = vunpack.c.h.b16 %v762
    %v854 = vunpack.c.l.b16 %v763
    %v855 = vunpack.c.h.b16 %v763
    %v856 = vunpack.c.l.b16 %v764
    %v857 = vunpack.c.h.b16 %v764
    %v858 = vunpack.c.l.b16 %v765
    %v859 = vunpack.c.h.b16 %v765
    %v860 = vunpack.c.l.b16 %v766
    %v861 = vunpack.c.h.b16 %v766
    %v862 = vunpack.c.l.b16 %v767
    %v863 = vunpack.c.h.b16 %v767
    %v864 = vunpack.c.l.b16 %v768
    %v865 = vunpack.c.h.b16 %v768
    %v866 = vunpack.c.l.b16 %v769
    %v867 = vunpack.c.h.b16 %v769
    %v868 = vunpack.c.l.b16 %v770
    %v869 = vunpack.c.h.b16 %v770
    %v870 = vunpack.c.l.b16 %v771
    %v871 = vunpack.c.h.b16 %v771
    %v872 = vunpack.c.l.b16 %v772
    %v873 = vunpack.c.h.b16 %v772
    %v874 = vunpack.c.l.b16 %v773
    %v875 = vunpack.c.h.b16 %v773
    %v876 = vpack.c.b16 %v814, %v812
    %v877 = vpack.c.b16 %v815, %v813
    %v878 = vpack.c.b16 %v818, %v816
    %v879 = vpack.c.b16 %v819, %v817
    %v880 = vpack.c.b16 %v822, %v820
    %v881 = vpack.c.b16 %v823, %v821
    %v882 = vpack.c.b16 %v826, %v824
    %v883 = vpack.c.b16 %v827, %v825
    %v884 = vpack.c.b16 %v830, %v828
    %v885 = vpack.c.b16 %v831, %v829
    %v886 = vpack.c.b16 %v834, %v832
    %v887 = vpack.c.b16 %v835, %v833
    %v888 = vpack.c.b16 %v838, %v836
    %v889 = vpack.c.b16 %v839, %v837
    %v890 = vpack.c.b16 %v842, %v840
    %v891 = vpack.c.b16 %v843, %v841
    %v892 = vpack.c.b16 %v846, %v844
    %v893 = vpack.c.b16 %v847, %v845
    %v894 = vpack.c.b16 %v850, %v848
    %v895 = vpack.c.b16 %v851, %v849
    %v896 = vpack.c.b16 %v854, %v852
    %v897 = vpack.c.b16 %v855, %v853
    %v898 = vpack.c.b16 %v858, %v856
    %v899 = vpack.c.b16 %v859, %v857
    %v900 = vpack.c.b16 %v862, %v860
    %v901 = vpack.c.b16 %v863, %v861
    %v902 = vpack.c.b16 %v866, %v864
    %v903 = vpack.c.b16 %v867, %v865
    %v904 = vpack.c.b16 %v870, %v868
    %v905 = vpack.c.b16 %v871, %v869
    %v906 = vpack.c.b16 %v874, %v872
    %v907 = vpack.c.b16 %v875, %v873
    %940 = vmatpush.bf16.msra.mxu0 %v890
    %941 = vmatpush.bf16.msra.mxu0 %v888
    %942 = vmatpush.bf16.msra.mxu0 %v886
    %943 = vmatpush.bf16.msra.mxu0 %v884
    %944 = vmatpush.bf16.msra.mxu0 %v882
    %945 = vmatpush.bf16.msra.mxu0 %v880
    %946 = vmatpush.bf16.msra.mxu0 %v878
    %947 = vmatpush.bf16.msra.mxu0 %v876
    %948 = vmatmul.bf16.gmra.mxu0 %v740
    %v949 = vpop.f32.mrf.mxu0
    %v950 = vadd.f32 %v776, %v949
    %v951 = vpop.f32.mrf.mxu0
    %v952 = vadd.f32 %v776, %v951
    %953 = vdwg.mxu0
    %954 = vmatpush.bf16.msra.mxu0 %v906
    %955 = vmatpush.bf16.msra.mxu0 %v904
    %956 = vmatpush.bf16.msra.mxu0 %v902
    %957 = vmatpush.bf16.msra.mxu0 %v900
    %958 = vmatpush.bf16.msra.mxu0 %v898
    %959 = vmatpush.bf16.msra.mxu0 %v896
    %960 = vmatpush.bf16.msra.mxu0 %v894
    %961 = vmatpush.bf16.msra.mxu0 %v892
    %962 = vmatmul.bf16.gmra.mxu0 %v741
    %v963 = vpop.f32.mrf.mxu0
    %v964 = vadd.f32 %v950, %v963
    %v965 = vpop.f32.mrf.mxu0
    %v966 = vadd.f32 %v952, %v965
    %967 = vdwg.mxu0
    %968 = vmatpush.bf16.msra.mxu0 %v891
    %969 = vmatpush.bf16.msra.mxu0 %v889
    %970 = vmatpush.bf16.msra.mxu0 %v887
    %971 = vmatpush.bf16.msra.mxu0 %v885
    %972 = vmatpush.bf16.msra.mxu0 %v883
    %973 = vmatpush.bf16.msra.mxu0 %v881
    %974 = vmatpush.bf16.msra.mxu0 %v879
    %975 = vmatpush.bf16.msra.mxu0 %v877
    %976 = vmatmul.bf16.gmra.mxu0 %v740
    %v977 = vpop.f32.mrf.mxu0
    %v978 = vadd.f32 %v777, %v977
    %v979 = vpop.f32.mrf.mxu0
    %v980 = vadd.f32 %v777, %v979
    %981 = vdwg.mxu0
    %982 = vmatpush.bf16.msra.mxu0 %v907
    %983 = vmatpush.bf16.msra.mxu0 %v905
    %984 = vmatpush.bf16.msra.mxu0 %v903
    %985 = vmatpush.bf16.msra.mxu0 %v901
    %986 = vmatpush.bf16.msra.mxu0 %v899
    %987 = vmatpush.bf16.msra.mxu0 %v897
    %988 = vmatpush.bf16.msra.mxu0 %v895
    %989 = vmatpush.bf16.msra.mxu0 %v893
    %990 = vmatmul.bf16.gmra.mxu0 %v741
    %v991 = vpop.f32.mrf.mxu0
    %v992 = vadd.f32 %v978, %v991
    %v993 = vpop.f32.mrf.mxu0
    %v994 = vadd.f32 %v980, %v993
    %995 = vdwg.mxu0
    %v996 = vadd.f32 %v198, %v964
    %v997 = vadd.f32 %v212, %v992
    %v998 = vadd.f32 %v200, %v966
    %v999 = vadd.f32 %v214, %v994
    %v1000 = vmax.f32 %v996, 0.0
    %v1001 = vmax.f32 %v997, 0.0
    %v1002 = vmax.f32 %v998, 0.0
    %v1003 = vmax.f32 %v999, 0.0
    %v1004 = vpack.c.bf16 %v1002, %v1000
    %v1005 = vpack.c.bf16 %v1003, %v1001
    %v1006 = vld [vmem:[#allocation13] sm:$0xf]
    %v1007 = vld [vmem:[#allocation13 + $0x4] sm:$0xf]
    %v1008 = vld [vmem:[#allocation13 + $0x8] sm:$0xf]
    %v1009 = vld [vmem:[#allocation13 + $0xc] sm:$0xf]
    %v1010 = vld [vmem:[#allocation13 + $0x10] sm:$0xf]
    %v1011 = vld [vmem:[#allocation13 + $0x14] sm:$0xf]
    %v1012 = vld [vmem:[#allocation13 + $0x18] sm:$0xf]
    %v1013 = vld [vmem:[#allocation13 + $0x1c] sm:$0xf]
    %v1014 = vld [vmem:[#allocation13 + $0x20] sm:$0xf]
    %v1015 = vld [vmem:[#allocation13 + $0x24] sm:$0xf]
    %v1016 = vld [vmem:[#allocation13 + $0x28] sm:$0xf]
    %v1017 = vld [vmem:[#allocation13 + $0x2c] sm:$0xf]
    %v1018 = vld [vmem:[#allocation13 + $0x30] sm:$0xf]
    %v1019 = vld [vmem:[#allocation13 + $0x34] sm:$0xf]
    %v1020 = vld [vmem:[#allocation13 + $0x38] sm:$0xf]
    %v1021 = vld [vmem:[#allocation13 + $0x3c] sm:$0xf]
    %v1022 = vld [vmem:[#allocation13 + $0x40] sm:$0xf]
    %v1023 = vld [vmem:[#allocation13 + $0x44] sm:$0xf]
    %v1024 = vld [vmem:[#allocation13 + $0x48] sm:$0xf]
    %v1025 = vld [vmem:[#allocation13 + $0x4c] sm:$0xf]
    %v1026 = vld [vmem:[#allocation13 + $0x50] sm:$0xf]
    %v1027 = vld [vmem:[#allocation13 + $0x54] sm:$0xf]
    %v1028 = vld [vmem:[#allocation13 + $0x58] sm:$0xf]
    %v1029 = vld [vmem:[#allocation13 + $0x5c] sm:$0xf]
    %v1030 = vld [vmem:[#allocation13 + $0x60] sm:$0xf]
    %v1031 = vld [vmem:[#allocation13 + $0x64] sm:$0xf]
    %v1032 = vld [vmem:[#allocation13 + $0x68] sm:$0xf]
    %v1033 = vld [vmem:[#allocation13 + $0x6c] sm:$0xf]
    %v1034 = vld [vmem:[#allocation13 + $0x70] sm:$0xf]
    %v1035 = vld [vmem:[#allocation13 + $0x74] sm:$0xf]
    %v1036 = vld [vmem:[#allocation13 + $0x78] sm:$0xf]
    %v1037 = vld [vmem:[#allocation13 + $0x7c] sm:$0xf]
    %v1038 = vld [vmem:[%s10] sm:$0x1]
    %v1040 = vperm.slane %v1038, 0
    %v1074 = vunpack.c.l.b16 %v1006
    %v1075 = vunpack.c.l.b16 %v1007
    %v1076 = vunpack.c.l.b16 %v1008
    %v1077 = vunpack.c.l.b16 %v1009
    %v1078 = vunpack.c.l.b16 %v1010
    %v1079 = vunpack.c.l.b16 %v1011
    %v1080 = vunpack.c.l.b16 %v1012
    %v1081 = vunpack.c.l.b16 %v1013
    %v1082 = vunpack.c.l.b16 %v1014
    %v1083 = vunpack.c.l.b16 %v1015
    %v1084 = vunpack.c.l.b16 %v1016
    %v1085 = vunpack.c.l.b16 %v1017
    %v1086 = vunpack.c.l.b16 %v1018
    %v1087 = vunpack.c.l.b16 %v1019
    %v1088 = vunpack.c.l.b16 %v1020
    %v1089 = vunpack.c.l.b16 %v1021
    %v1090 = vunpack.c.l.b16 %v1022
    %v1091 = vunpack.c.l.b16 %v1023
    %v1092 = vunpack.c.l.b16 %v1024
    %v1093 = vunpack.c.l.b16 %v1025
    %v1094 = vunpack.c.l.b16 %v1026
    %v1095 = vunpack.c.l.b16 %v1027
    %v1096 = vunpack.c.l.b16 %v1028
    %v1097 = vunpack.c.l.b16 %v1029
    %v1098 = vunpack.c.l.b16 %v1030
    %v1099 = vunpack.c.l.b16 %v1031
    %v1100 = vunpack.c.l.b16 %v1032
    %v1101 = vunpack.c.l.b16 %v1033
    %v1102 = vunpack.c.l.b16 %v1034
    %v1103 = vunpack.c.l.b16 %v1035
    %v1104 = vunpack.c.l.b16 %v1036
    %v1105 = vunpack.c.l.b16 %v1037
    %v1106 = vpack.c.b16 %v1075, %v1074
    %v1107 = vpack.c.b16 %v1077, %v1076
    %v1108 = vpack.c.b16 %v1079, %v1078
    %v1109 = vpack.c.b16 %v1081, %v1080
    %v1110 = vpack.c.b16 %v1083, %v1082
    %v1111 = vpack.c.b16 %v1085, %v1084
    %v1112 = vpack.c.b16 %v1087, %v1086
    %v1113 = vpack.c.b16 %v1089, %v1088
    %v1114 = vpack.c.b16 %v1091, %v1090
    %v1115 = vpack.c.b16 %v1093, %v1092
    %v1116 = vpack.c.b16 %v1095, %v1094
    %v1117 = vpack.c.b16 %v1097, %v1096
    %v1118 = vpack.c.b16 %v1099, %v1098
    %v1119 = vpack.c.b16 %v1101, %v1100
    %v1120 = vpack.c.b16 %v1103, %v1102
    %v1121 = vpack.c.b16 %v1105, %v1104
    %1138 = vmatpush.bf16.msra.mxu0 %v1113
    %1139 = vmatpush.bf16.msra.mxu0 %v1112
    %1140 = vmatpush.bf16.msra.mxu0 %v1111
    %1141 = vmatpush.bf16.msra.mxu0 %v1110
    %1142 = vmatpush.bf16.msra.mxu0 %v1109
    %1143 = vmatpush.bf16.msra.mxu0 %v1108
    %1144 = vmatpush.bf16.msra.mxu0 %v1107
    %1145 = vmatpush.bf16.msra.mxu0 %v1106
    %1146 = vmatmul.bf16.gmra.mxu0 %v1004
    %v1147 = vpop.f32.mrf.mxu0
    %v1148 = vadd.f32 %v1040, %v1147
    %v1149 = vpop.f32.mrf.mxu0
    %v1150 = vadd.f32 %v1040, %v1149
    %1151 = vdwg.mxu0
    %1152 = vmatpush.bf16.msra.mxu0 %v1121
    %1153 = vmatpush.bf16.msra.mxu0 %v1120
    %1154 = vmatpush.bf16.msra.mxu0 %v1119
    %1155 = vmatpush.bf16.msra.mxu0 %v1118
    %1156 = vmatpush.bf16.msra.mxu0 %v1117
    %1157 = vmatpush.bf16.msra.mxu0 %v1116
    %1158 = vmatpush.bf16.msra.mxu0 %v1115
    %1159 = vmatpush.bf16.msra.mxu0 %v1114
    %1160 = vmatmul.bf16.gmra.mxu0 %v1005
    %v1161 = vpop.f32.mrf.mxu0
    %v1162 = vadd.f32 %v1148, %v1161
    %v1163 = vpop.f32.mrf.mxu0
    %v1164 = vadd.f32 %v1150, %v1163
    %1165 = vdwg.mxu0
    %1166 = vst [vmem:[#allocation14] sm:$0xff] %v1162
    %1167 = vst [vmem:[#allocation14 + $0x8] sm:$0xff] %v1164
    // Predicated region
    $region74: #{tpu_custom_call.1} parent=1 // pred_check
      _
    $region75: #{tpu_custom_call.1} parent=1 // pred_check_branch
      %1169 = sbr.rel (0) target = $region77
    $region76: #{tpu_custom_call.1} parent=1 // pred_region
      %1171 = vsyncadd [#allocation4], 0
      %s1172 = sshll.u32 [#allocation14], 4
      %s1173 = int_to_ptr.vmem [resolvable:$true] %s1172
      %s1174 = sshll.u32 %s11, 4
      %s1175 = int_to_ptr.hbm [resolvable:$true] %s1174
      %1180 = dma.vmem_to_hbm [thread:$0]  %s1173, 256, %s1175, [#allocation4], 128, 128, 8
    $region77: #{tpu_custom_call.1} parent=1 // pred_fallthru
      _
    // Predicated region
    $region78: #{tpu_custom_call.1} parent=1 // pred_check
      _
    $region79: #{tpu_custom_call.1} parent=1 // pred_check_branch
      %1182 = sbr.rel (0) target = $region81
    $region80: #{tpu_custom_call.1} parent=1 // pred_region
      %1184 = dma.done [#allocation4], 256
    $region81: #{tpu_custom_call.1} parent=1 // pred_fallthru
      _
    %1185 = vsyncpa [#allocation3], 1
    %1186 = vsyncpa [#allocation6], 1
    %1187 = vsyncpa [#allocation9], 1
    %1188 = vsyncpa [#allocation12], 1
    %1189 = vsyncpa [#allocation4], 1

</llo_original>
